<compile_context>
chip_gen: v5e
topology: v5e:2x2
jax: 0.10.0
libtpu: 0.0.40
codegen_flags: <defaults>
</compile_context>

<pallas_src>
import jax
import jax.numpy as jnp
from jax.experimental import pallas as pl
from jax.experimental.pallas import tpu as pltpu

_LANE = 128                          # lane / MXU alignment
_VMEM_LIMIT = 48 * 1024 * 1024       # safe on v5e/v6e (128 MiB) and v7x (64 MiB)


def _round_up(x, m):
    return ((x + m - 1) // m) * m


def _pick_tile(dim, preferred):
    for t in preferred:
        if dim % t == 0:
            return t
    return dim


# ---------------------------------------------------------------------------
# Kernel bodies
# ---------------------------------------------------------------------------

def _agg_then_project_kernel(adj_ref, x_ref, wt_ref, o_ref, acc_ref):
    """out[i] = (sum_k adj[i,k] @ x[k]) @ W^T, accumulated over grid axis 1."""
    k = pl.program_id(1)

    @pl.when(k == 0)
    def _():
        acc_ref[...] = jnp.zeros_like(acc_ref)

    acc_ref[...] += jnp.dot(adj_ref[...], x_ref[...],
                            preferred_element_type=jnp.float32)

    @pl.when(k == pl.num_programs(1) - 1)
    def _():
        o_ref[...] = jnp.dot(
            acc_ref[...].astype(wt_ref.dtype), wt_ref[...],
            preferred_element_type=jnp.float32,
        ).astype(o_ref.dtype)


def _project_kernel(x_ref, wt_ref, h_ref):
    """h[i] = x[i] @ W^T (row-tiled; pre-transposed weight stays resident)."""
    h_ref[...] = jnp.dot(x_ref[...], wt_ref[...],
                         preferred_element_type=jnp.float32).astype(h_ref.dtype)


def _aggregate_kernel(adj_ref, h_ref, o_ref, acc_ref):
    """out[i] = sum_k adj[i,k] @ h[k], accumulated over grid axis 1."""
    k = pl.program_id(1)

    @pl.when(k == 0)
    def _():
        acc_ref[...] = jnp.zeros_like(acc_ref)

    acc_ref[...] += jnp.dot(adj_ref[...], h_ref[...],
                            preferred_element_type=jnp.float32)

    @pl.when(k == pl.num_programs(1) - 1)
    def _():
        o_ref[...] = acc_ref[...].astype(o_ref.dtype)


# ---------------------------------------------------------------------------
# Wrapper
# ---------------------------------------------------------------------------

def graph_conv(x, weight, adj, tm=None, tk=None):
    """adj @ (x @ weight.T) — GraphConv forward.

    x:      [N, F_in]
    weight: [F_out, F_in]   (PyTorch nn.Linear layout)
    adj:    [N, N]
    returns [N, F_out] in x.dtype
    """
    n, f_in = x.shape
    f_out, f_in_w = weight.shape
    assert f_in == f_in_w
    assert adj.shape == (n, n)

    # Lane-aligned padded sizes: full MXU tiles + lane-dense (unmasked) stores.
    n_pad = _round_up(n, _LANE)
    f_in_pad = _round_up(f_in, _LANE)
    f_out_pad = _round_up(f_out, _LANE)

    # Row tile (parallel grid axis) and adj-contraction tile (arbitrary axis).
    tm = tm or _pick_tile(n_pad, (256, 128))
    tk = tk or _pick_tile(n_pad, (512, 256, 128))
    grid_m, grid_k = n_pad // tm, n_pad // tk

    compute_dtype = jnp.bfloat16  # MXU-native feeds; accumulation stays f32.

    # Pad + cast once outside the hot loop (cheap XLA ops).
    xp = jnp.pad(x, ((0, n_pad - n), (0, f_in_pad - f_in))).astype(compute_dtype)
    adjp = jnp.pad(adj, ((0, n_pad - n), (0, n_pad - n))).astype(compute_dtype)
    # Pre-transposed weight [F_in, F_out]: no XLU transpose inside the kernel.
    wtp = jnp.pad(
        weight.T, ((0, f_in_pad - f_in), (0, f_out_pad - f_out))
    ).astype(compute_dtype)

    params2d = pltpu.CompilerParams(
        dimension_semantics=("parallel", "arbitrary"),
        vmem_limit_bytes=_VMEM_LIMIT,
    )

    if f_in_pad <= f_out_pad:
        # out = (adj @ x) @ W^T — O(N^2) contraction runs over F_in (smaller).
        out_pad = pl.pallas_call(
            _agg_then_project_kernel,
            out_shape=jax.ShapeDtypeStruct((n_pad, f_out_pad), jnp.float32),
            grid_spec=pltpu.PrefetchScalarGridSpec(
                num_scalar_prefetch=0,
                grid=(grid_m, grid_k),
                in_specs=[
                    pl.BlockSpec((tm, tk), lambda i, k: (i, k)),               # adj
                    pl.BlockSpec((tk, f_in_pad), lambda i, k: (k, 0)),         # x
                    pl.BlockSpec((f_in_pad, f_out_pad), lambda i, k: (0, 0)),  # W^T
                ],
                out_specs=pl.BlockSpec((tm, f_out_pad), lambda i, k: (i, 0)),
                scratch_shapes=[pltpu.VMEM((tm, f_in_pad), jnp.float32)],
            ),
            compiler_params=params2d,
        )(adjp, xp, wtp)
    else:
        # h = x @ W^T (materialize the smaller [N, F_out] intermediate) ...
        h = pl.pallas_call(
            _project_kernel,
            out_shape=jax.ShapeDtypeStruct((n_pad, f_out_pad), compute_dtype),
            grid_spec=pltpu.PrefetchScalarGridSpec(
                num_scalar_prefetch=0,
                grid=(grid_m,),
                in_specs=[
                    pl.BlockSpec((tm, f_in_pad), lambda i: (i, 0)),
                    pl.BlockSpec((f_in_pad, f_out_pad), lambda i: (0, 0)),
                ],
                out_specs=pl.BlockSpec((tm, f_out_pad), lambda i: (i, 0)),
            ),
            compiler_params=pltpu.CompilerParams(
                dimension_semantics=("parallel",),
                vmem_limit_bytes=_VMEM_LIMIT,
            ),
        )(xp, wtp)

        # ... then out = adj @ h with the tiled k contraction.
        out_pad = pl.pallas_call(
            _aggregate_kernel,
            out_shape=jax.ShapeDtypeStruct((n_pad, f_out_pad), jnp.float32),
            grid_spec=pltpu.PrefetchScalarGridSpec(
                num_scalar_prefetch=0,
                grid=(grid_m, grid_k),
                in_specs=[
                    pl.BlockSpec((tm, tk), lambda i, k: (i, k)),        # adj
                    pl.BlockSpec((tk, f_out_pad), lambda i, k: (k, 0)), # h
                ],
                out_specs=pl.BlockSpec((tm, f_out_pad), lambda i, k: (i, 0)),
                scratch_shapes=[pltpu.VMEM((tm, f_out_pad), jnp.float32)],
            ),
            compiler_params=params2d,
        )(adjp, h)

    return out_pad[:n, :f_out].astype(x.dtype)


if __name__ == "__main__":
    # Small, module-consistent shapes: N graph nodes, in/out feature dims.
    N, F_IN, F_OUT = 16, 32, 32

    key = jax.random.PRNGKey(0)
    kx, ka, kw = jax.random.split(key, 3)

    x = jax.random.normal(kx, (N, F_IN), dtype=jnp.float32)

    # Symmetric, row-normalized adjacency (typical GCN input), deterministic.
    a = jax.random.uniform(ka, (N, N), dtype=jnp.float32)
    a = (a + a.T) * 0.5 + jnp.eye(N, dtype=jnp.float32)
    adj = a / jnp.sum(a, axis=-1, keepdims=True)

    # nn.Linear(in_features, out_features, bias=False) weight: [F_OUT, F_IN].
    bound = 1.0 / jnp.sqrt(jnp.float32(F_IN))
    weight = jax.random.uniform(
        kw, (F_OUT, F_IN), dtype=jnp.float32, minval=-bound, maxval=bound
    )

    out = jax.jit(graph_conv)(x, weight, adj)
    out = jax.block_until_ready(out)

    # Reference check in plain JAX (f32). Kernel feeds the MXU bf16 with f32
    # accumulation, so use a bf16-level tolerance.
    ref = adj @ (x @ weight.T)
    assert out.shape == (N, F_OUT)
    assert jnp.allclose(out, ref, atol=2e-2, rtol=2e-2), float(
        jnp.max(jnp.abs(out - ref))
    )

    print("KERNEL_OK")
</pallas_src>

<mosaic_0001>
module attributes {stable_mosaic.version = 11 : i64} {
  func.func @_agg_then_project_kernel(%arg0: i32, %arg1: i32, %arg2: memref<128x128xbf16, #tpu.memory_space<vmem>>, %arg3: memref<128x128xbf16, #tpu.memory_space<vmem>>, %arg4: memref<128x128xbf16, #tpu.memory_space<vmem>>, %arg5: memref<128x128xf32, #tpu.memory_space<vmem>>, %arg6: memref<128x128xf32, #tpu.memory_space<vmem>>) attributes {dimension_semantics = [#tpu.dimension_semantics<parallel>, #tpu.dimension_semantics<arbitrary>], iteration_bounds = array<i64: 1, 1>, scalar_prefetch = 0 : i64, scratch_operands = 1 : i64, tpu.core_type = #tpu.core_type<tc>, window_params = [{transform_indices = @transform_0, window_bounds = array<i64: 128, 128>}, {transform_indices = @transform_1, window_bounds = array<i64: 128, 128>}, {pipeline_mode = #tpu.pipeline_mode<synchronous>, transform_indices = @transform_2, window_bounds = array<i64: 128, 128>}, {transform_indices = @transform_3, window_bounds = array<i64: 128, 128>}]} {
    %c0_i32 = arith.constant 0 : i32
    %0 = arith.cmpi eq, %arg1, %c0_i32 : i32
    %1 = arith.extui %0 : i1 to i32
    %c0_i32_0 = arith.constant 0 : i32
    %2 = arith.cmpi ne, %1, %c0_i32_0 : i32
    scf.if %2 {
      %cst_10 = arith.constant 0.000000e+00 : f32
      %12 = vector.broadcast %cst_10 : f32 to vector<128x128xf32>
      %c0_11 = arith.constant 0 : index
      %c0_12 = arith.constant 0 : index
      %13 = vector.load %arg6[%c0_11, %c0_12] : memref<128x128xf32, #tpu.memory_space<vmem>>, vector<128x128xf32>
      tpu.vector_store %arg6[%c0_11, %c0_12], %12 {strides = array<i32>} : memref<128x128xf32, #tpu.memory_space<vmem>>, vector<128x128xf32>,
    } else {
    }
    %c0 = arith.constant 0 : index
    %c0_1 = arith.constant 0 : index
    %3 = vector.load %arg6[%c0, %c0_1] : memref<128x128xf32, #tpu.memory_space<vmem>>, vector<128x128xf32>
    %c0_2 = arith.constant 0 : index
    %c0_3 = arith.constant 0 : index
    %4 = vector.load %arg2[%c0_2, %c0_3] : memref<128x128xbf16, #tpu.memory_space<vmem>>, vector<128x128xbf16>
    %c0_4 = arith.constant 0 : index
    %c0_5 = arith.constant 0 : index
    %5 = vector.load %arg3[%c0_4, %c0_5] : memref<128x128xbf16, #tpu.memory_space<vmem>>, vector<128x128xbf16>
    %cst = arith.constant dense<0.000000e+00> : vector<128x128xf32>
    %6 = tpu.matmul %4, %5, %cst {dimension_numbers = #tpu.dot_dimension_numbers<[1], [0], [0], [1], [0, 0, 1, 1], [], []>} : vector<128x128xbf16>, vector<128x128xbf16>, vector<128x128xf32> -> vector<128x128xf32>
    %7 = arith.addf %3, %6 : vector<128x128xf32>
    %c0_6 = arith.constant 0 : index
    %c0_7 = arith.constant 0 : index
    %8 = vector.load %arg6[%c0_6, %c0_7] : memref<128x128xf32, #tpu.memory_space<vmem>>, vector<128x128xf32>
    tpu.vector_store %arg6[%c0_6, %c0_7], %7 {strides = array<i32>} : memref<128x128xf32, #tpu.memory_space<vmem>>, vector<128x128xf32>,
    %c0_i32_8 = arith.constant 0 : i32
    %9 = arith.cmpi eq, %arg1, %c0_i32_8 : i32
    %10 = arith.extui %9 : i1 to i32
    %c0_i32_9 = arith.constant 0 : i32
    %11 = arith.cmpi ne, %10, %c0_i32_9 : i32
    scf.if %11 {
      %c0_10 = arith.constant 0 : index
      %c0_11 = arith.constant 0 : index
      %12 = vector.load %arg6[%c0_10, %c0_11] : memref<128x128xf32, #tpu.memory_space<vmem>>, vector<128x128xf32>
      %13 = arith.truncf %12 : vector<128x128xf32> to vector<128x128xbf16>
      %c0_12 = arith.constant 0 : index
      %c0_13 = arith.constant 0 : index
      %14 = vector.load %arg4[%c0_12, %c0_13] : memref<128x128xbf16, #tpu.memory_space<vmem>>, vector<128x128xbf16>
      %cst_14 = arith.constant dense<0.000000e+00> : vector<128x128xf32>
      %15 = tpu.matmul %13, %14, %cst_14 {dimension_numbers = #tpu.dot_dimension_numbers<[1], [0], [0], [1], [0, 0, 1, 1], [], []>} : vector<128x128xbf16>, vector<128x128xbf16>, vector<128x128xf32> -> vector<128x128xf32>
      %c0_15 = arith.constant 0 : index
      %c0_16 = arith.constant 0 : index
      %16 = vector.load %arg5[%c0_15, %c0_16] : memref<128x128xf32, #tpu.memory_space<vmem>>, vector<128x128xf32>
      tpu.vector_store %arg5[%c0_15, %c0_16], %15 {strides = array<i32>} : memref<128x128xf32, #tpu.memory_space<vmem>>, vector<128x128xf32>,
    } else {
    }
    return
  }
  func.func @transform_0(%arg0: i32, %arg1: i32) -> (i32, i32) {
    %c0_i32 = arith.constant 0 : i32
    return %arg0, %arg1 : i32, i32
  }
  func.func @transform_1(%arg0: i32, %arg1: i32) -> (i32, i32) {
    %c0_i32 = arith.constant 0 : i32
    %c0_i32_0 = arith.constant 0 : i32
    return %arg1, %c0_i32 : i32, i32
  }
  func.func @transform_2(%arg0: i32, %arg1: i32) -> (i32, i32) {
    %c0_i32 = arith.constant 0 : i32
    %c0_i32_0 = arith.constant 0 : i32
    %c0_i32_1 = arith.constant 0 : i32
    return %c0_i32, %c0_i32_0 : i32, i32
  }
  func.func @transform_3(%arg0: i32, %arg1: i32) -> (i32, i32) {
    %c0_i32 = arith.constant 0 : i32
    %c0_i32_0 = arith.constant 0 : i32
    return %arg0, %c0_i32 : i32, i32
  }
}

</mosaic_0001>

<llo_original>
// kernel: graph_conv.1
$region0: #{graph_conv.1}
  #allocation0 [shape = 'u32[]', space=smem, size = 0x4, offset = 0x4, fixed_abs, tag = 'smem constant byte address 0x4 - core index']
  #allocation1 [shape = 'u32[72,128]{1,0:T(1,128)}', space=vmem, size = 0x9000, scoped, tag = 'internal scratch']
  #allocation2 [shape = 'f32[128,128]{1,0:T(8,128)}', space=vmem, size = 0x10000, scoped, tag = 'scratch operand']
  %s0 = inlined_call_operand.vmem [shape: bf16[128,128], index: 0, kind: input, shape index: {}]
  %s1 = inlined_call_operand.vmem [shape: bf16[128,128], index: 1, kind: input, shape index: {}]
  %s2 = inlined_call_operand.vmem [shape: bf16[128,128], index: 2, kind: input, shape index: {}]
  %s3 = inlined_call_operand.vmem [shape: f32[128,128], index: 3, kind: output, shape index: {}]
  %s4 = sld [smem:[#allocation0]]
  $region30: #{graph_conv.1} parent=0
    _
  %s6 = ssub.s32 1, %s4
  %s7 = scalar_select 0, %s6, %s4
  // Predicated region
  $region2: #{graph_conv.1} parent=0 // pred_check
    _
  $region3: #{graph_conv.1} parent=0 // pred_check_branch
    %9 = sbr.rel (0) target = $region5
  $region4: #{graph_conv.1} parent=0 // pred_region
    _
  $region5: #{graph_conv.1} parent=0 // pred_fallthru
    _
  // Predicated region
  $region6: #{graph_conv.1} parent=0 // pred_check
    _
  $region7: #{graph_conv.1} parent=0 // pred_check_branch
    %11 = sbr.rel (0) target = $region9
  $region8: #{graph_conv.1} parent=0 // pred_region
    _
  $region9: #{graph_conv.1} parent=0 // pred_fallthru
    _
  // Predicated region
  $region10: #{graph_conv.1} parent=0 // pred_check
    _
  $region11: #{graph_conv.1} parent=0 // pred_check_branch
    %13 = sbr.rel (0) target = $region13
  $region12: #{graph_conv.1} parent=0 // pred_region
    _
  $region13: #{graph_conv.1} parent=0 // pred_fallthru
    _
  %p14 = scmp.eq.s32.totalorder 0, 0
  // Predicated region
  $region14: #{graph_conv.1} parent=0 // pred_check
    %p15 = pneg %p14
  $region15: #{graph_conv.1} parent=0 // pred_check_branch
    %17 = sbr.rel (%p15) target = $region17
  $region16: #{graph_conv.1} parent=0 // pred_region
    %18 = vst [vmem:[#allocation2] sm:$0xff] 0.0
    %19 = vst [vmem:[#allocation2 + $0x8] sm:$0xff] 0.0
    %20 = vst [vmem:[#allocation2 + $0x10] sm:$0xff] 0.0
    %21 = vst [vmem:[#allocation2 + $0x18] sm:$0xff] 0.0
    %22 = vst [vmem:[#allocation2 + $0x20] sm:$0xff] 0.0
    %23 = vst [vmem:[#allocation2 + $0x28] sm:$0xff] 0.0
    %24 = vst [vmem:[#allocation2 + $0x30] sm:$0xff] 0.0
    %25 = vst [vmem:[#allocation2 + $0x38] sm:$0xff] 0.0
    %26 = vst [vmem:[#allocation2 + $0x40] sm:$0xff] 0.0
    %27 = vst [vmem:[#allocation2 + $0x48] sm:$0xff] 0.0
    %28 = vst [vmem:[#allocation2 + $0x50] sm:$0xff] 0.0
    %29 = vst [vmem:[#allocation2 + $0x58] sm:$0xff] 0.0
    %30 = vst [vmem:[#allocation2 + $0x60] sm:$0xff] 0.0
    %31 = vst [vmem:[#allocation2 + $0x68] sm:$0xff] 0.0
    %32 = vst [vmem:[#allocation2 + $0x70] sm:$0xff] 0.0
    %33 = vst [vmem:[#allocation2 + $0x78] sm:$0xff] 0.0
  $region17: #{graph_conv.1} parent=0 // pred_fallthru
    _
  %v34 = vld [vmem:[#allocation2] sm:$0xff]
  %v35 = vld [vmem:[#allocation2 + $0x8] sm:$0xff]
  %v36 = vld [vmem:[#allocation2 + $0x10] sm:$0xff]
  %v37 = vld [vmem:[#allocation2 + $0x18] sm:$0xff]
  %v38 = vld [vmem:[#allocation2 + $0x20] sm:$0xff]
  %v39 = vld [vmem:[#allocation2 + $0x28] sm:$0xff]
  %v40 = vld [vmem:[#allocation2 + $0x30] sm:$0xff]
  %v41 = vld [vmem:[#allocation2 + $0x38] sm:$0xff]
  %v42 = vld [vmem:[#allocation2 + $0x40] sm:$0xff]
  %v43 = vld [vmem:[#allocation2 + $0x48] sm:$0xff]
  %v44 = vld [vmem:[#allocation2 + $0x50] sm:$0xff]
  %v45 = vld [vmem:[#allocation2 + $0x58] sm:$0xff]
  %v46 = vld [vmem:[#allocation2 + $0x60] sm:$0xff]
  %v47 = vld [vmem:[#allocation2 + $0x68] sm:$0xff]
  %v48 = vld [vmem:[#allocation2 + $0x70] sm:$0xff]
  %v49 = vld [vmem:[#allocation2 + $0x78] sm:$0xff]
  %v50 = vld [vmem:[%s0] sm:$0xf]
  %v51 = vld [vmem:[%s0 + $0x4] sm:$0xf]
  %v52 = vld [vmem:[%s0 + $0x8] sm:$0xf]
  %v53 = vld [vmem:[%s0 + $0xc] sm:$0xf]
  %v54 = vld [vmem:[%s0 + $0x10] sm:$0xf]
  %v55 = vld [vmem:[%s0 + $0x14] sm:$0xf]
  %v56 = vld [vmem:[%s0 + $0x18] sm:$0xf]
  %v57 = vld [vmem:[%s0 + $0x1c] sm:$0xf]
  %v58 = vld [vmem:[%s0 + $0x20] sm:$0xf]
  %v59 = vld [vmem:[%s0 + $0x24] sm:$0xf]
  %v60 = vld [vmem:[%s0 + $0x28] sm:$0xf]
  %v61 = vld [vmem:[%s0 + $0x2c] sm:$0xf]
  %v62 = vld [vmem:[%s0 + $0x30] sm:$0xf]
  %v63 = vld [vmem:[%s0 + $0x34] sm:$0xf]
  %v64 = vld [vmem:[%s0 + $0x38] sm:$0xf]
  %v65 = vld [vmem:[%s0 + $0x3c] sm:$0xf]
  %v66 = vld [vmem:[%s1] sm:$0xf]
  %v67 = vld [vmem:[%s1 + $0x4] sm:$0xf]
  %v68 = vld [vmem:[%s1 + $0x8] sm:$0xf]
  %v69 = vld [vmem:[%s1 + $0xc] sm:$0xf]
  %v70 = vld [vmem:[%s1 + $0x10] sm:$0xf]
  %v71 = vld [vmem:[%s1 + $0x14] sm:$0xf]
  %v72 = vld [vmem:[%s1 + $0x18] sm:$0xf]
  %v73 = vld [vmem:[%s1 + $0x1c] sm:$0xf]
  %v74 = vld [vmem:[%s1 + $0x20] sm:$0xf]
  %v75 = vld [vmem:[%s1 + $0x24] sm:$0xf]
  %v76 = vld [vmem:[%s1 + $0x28] sm:$0xf]
  %v77 = vld [vmem:[%s1 + $0x2c] sm:$0xf]
  %v78 = vld [vmem:[%s1 + $0x30] sm:$0xf]
  %v79 = vld [vmem:[%s1 + $0x34] sm:$0xf]
  %v80 = vld [vmem:[%s1 + $0x38] sm:$0xf]
  %v81 = vld [vmem:[%s1 + $0x3c] sm:$0xf]
  %v98 = vunpack.c.l.b16 %v50
  %v99 = vunpack.c.l.b16 %v51
  %v100 = vunpack.c.l.b16 %v52
  %v101 = vunpack.c.l.b16 %v53
  %v102 = vunpack.c.l.b16 %v54
  %v103 = vunpack.c.l.b16 %v55
  %v104 = vunpack.c.l.b16 %v56
  %v105 = vunpack.c.l.b16 %v57
  %v106 = vunpack.c.l.b16 %v58
  %v107 = vunpack.c.l.b16 %v59
  %v108 = vunpack.c.l.b16 %v60
  %v109 = vunpack.c.l.b16 %v61
  %v110 = vunpack.c.l.b16 %v62
  %v111 = vunpack.c.l.b16 %v63
  %v112 = vunpack.c.l.b16 %v64
  %v113 = vunpack.c.l.b16 %v65
  %v114 = vpack.c.b16 %v99, %v98
  %v115 = vpack.c.b16 %v101, %v100
  %v116 = vpack.c.b16 %v103, %v102
  %v117 = vpack.c.b16 %v105, %v104
  %v118 = vpack.c.b16 %v107, %v106
  %v119 = vpack.c.b16 %v109, %v108
  %v120 = vpack.c.b16 %v111, %v110
  %v121 = vpack.c.b16 %v113, %v112
  %v146 = vunpack.c.l.b16 %v66
  %v147 = vunpack.c.l.b16 %v67
  %v148 = vunpack.c.l.b16 %v68
  %v149 = vunpack.c.l.b16 %v69
  %v150 = vunpack.c.l.b16 %v70
  %v151 = vunpack.c.l.b16 %v71
  %v152 = vunpack.c.l.b16 %v72
  %v153 = vunpack.c.l.b16 %v73
  %v154 = vunpack.c.l.b16 %v74
  %v155 = vunpack.c.l.b16 %v75
  %v156 = vunpack.c.l.b16 %v76
  %v157 = vunpack.c.l.b16 %v77
  %v158 = vunpack.c.l.b16 %v78
  %v159 = vunpack.c.l.b16 %v79
  %v160 = vunpack.c.l.b16 %v80
  %v161 = vunpack.c.l.b16 %v81
  %v162 = vpack.c.b16 %v147, %v146
  %v163 = vpack.c.b16 %v149, %v148
  %v164 = vpack.c.b16 %v151, %v150
  %v165 = vpack.c.b16 %v153, %v152
  %v166 = vpack.c.b16 %v155, %v154
  %v167 = vpack.c.b16 %v157, %v156
  %v168 = vpack.c.b16 %v159, %v158
  %v169 = vpack.c.b16 %v161, %v160
  %178 = vmatpush.bf16.msra.mxu0 %v169
  %179 = vmatpush.bf16.msra.mxu0 %v168
  %180 = vmatpush.bf16.msra.mxu0 %v167
  %181 = vmatpush.bf16.msra.mxu0 %v166
  %182 = vmatpush.bf16.msra.mxu0 %v165
  %183 = vmatpush.bf16.msra.mxu0 %v164
  %184 = vmatpush.bf16.msra.mxu0 %v163
  %185 = vmatpush.bf16.msra.mxu0 %v162
  %186 = vmatmul.bf16.gmra.mxu0 %v114
  %v187 = vpop.f32.mrf.mxu0
  %v188 = vadd.f32 0.0, %v187
  %v189 = vpop.f32.mrf.mxu0
  %v190 = vadd.f32 0.0, %v189
  %191 = vmatmul.bf16.gmra.mxu0 %v115
  %v192 = vpop.f32.mrf.mxu0
  %v193 = vadd.f32 0.0, %v192
  %v194 = vpop.f32.mrf.mxu0
  %v195 = vadd.f32 0.0, %v194
  %196 = vmatmul.bf16.gmra.mxu0 %v116
  %v197 = vpop.f32.mrf.mxu0
  %v198 = vadd.f32 0.0, %v197
  %v199 = vpop.f32.mrf.mxu0
  %v200 = vadd.f32 0.0, %v199
  %201 = vmatmul.bf16.gmra.mxu0 %v117
  %v202 = vpop.f32.mrf.mxu0
  %v203 = vadd.f32 0.0, %v202
  %v204 = vpop.f32.mrf.mxu0
  %v205 = vadd.f32 0.0, %v204
  %206 = vmatmul.bf16.gmra.mxu0 %v118
  %v207 = vpop.f32.mrf.mxu0
  %v208 = vadd.f32 0.0, %v207
  %v209 = vpop.f32.mrf.mxu0
  %v210 = vadd.f32 0.0, %v209
  %211 = vmatmul.bf16.gmra.mxu0 %v119
  %v212 = vpop.f32.mrf.mxu0
  %v213 = vadd.f32 0.0, %v212
  %v214 = vpop.f32.mrf.mxu0
  %v215 = vadd.f32 0.0, %v214
  %216 = vmatmul.bf16.gmra.mxu0 %v120
  %v217 = vpop.f32.mrf.mxu0
  %v218 = vadd.f32 0.0, %v217
  %v219 = vpop.f32.mrf.mxu0
  %v220 = vadd.f32 0.0, %v219
  %221 = vmatmul.bf16.gmra.mxu0 %v121
  %v222 = vpop.f32.mrf.mxu0
  %v223 = vadd.f32 0.0, %v222
  %v224 = vpop.f32.mrf.mxu0
  %v225 = vadd.f32 0.0, %v224
  %226 = vdwg.mxu0
  %v227 = vadd.f32 %v34, %v188
  %v228 = vadd.f32 %v35, %v190
  %v229 = vadd.f32 %v36, %v193
  %v230 = vadd.f32 %v37, %v195
  %v231 = vadd.f32 %v38, %v198
  %v232 = vadd.f32 %v39, %v200
  %v233 = vadd.f32 %v40, %v203
  %v234 = vadd.f32 %v41, %v205
  %v235 = vadd.f32 %v42, %v208
  %v236 = vadd.f32 %v43, %v210
  %v237 = vadd.f32 %v44, %v213
  %v238 = vadd.f32 %v45, %v215
  %v239 = vadd.f32 %v46, %v218
  %v240 = vadd.f32 %v47, %v220
  %v241 = vadd.f32 %v48, %v223
  %v242 = vadd.f32 %v49, %v225
  %243 = vst [vmem:[#allocation2] sm:$0xff] %v227
  %244 = vst [vmem:[#allocation2 + $0x8] sm:$0xff] %v228
  %245 = vst [vmem:[#allocation2 + $0x10] sm:$0xff] %v229
  %246 = vst [vmem:[#allocation2 + $0x18] sm:$0xff] %v230
  %247 = vst [vmem:[#allocation2 + $0x20] sm:$0xff] %v231
  %248 = vst [vmem:[#allocation2 + $0x28] sm:$0xff] %v232
  %249 = vst [vmem:[#allocation2 + $0x30] sm:$0xff] %v233
  %250 = vst [vmem:[#allocation2 + $0x38] sm:$0xff] %v234
  %251 = vst [vmem:[#allocation2 + $0x40] sm:$0xff] %v235
  %252 = vst [vmem:[#allocation2 + $0x48] sm:$0xff] %v236
  %253 = vst [vmem:[#allocation2 + $0x50] sm:$0xff] %v237
  %254 = vst [vmem:[#allocation2 + $0x58] sm:$0xff] %v238
  %255 = vst [vmem:[#allocation2 + $0x60] sm:$0xff] %v239
  %256 = vst [vmem:[#allocation2 + $0x68] sm:$0xff] %v240
  %257 = vst [vmem:[#allocation2 + $0x70] sm:$0xff] %v241
  %258 = vst [vmem:[#allocation2 + $0x78] sm:$0xff] %v242
  // Predicated region
  $region18: #{graph_conv.1} parent=0 // pred_check
    %p259 = pneg %p14
  $region19: #{graph_conv.1} parent=0 // pred_check_branch
    %261 = sbr.rel (%p259) target = $region21
  $region20: #{graph_conv.1} parent=0 // pred_region
    %v262 = vld [vmem:[#allocation2] sm:$0xff]
    %v263 = vld [vmem:[#allocation2 + $0x8] sm:$0xff]
    %v264 = vld [vmem:[#allocation2 + $0x10] sm:$0xff]
    %v265 = vld [vmem:[#allocation2 + $0x18] sm:$0xff]
    %v266 = vld [vmem:[#allocation2 + $0x20] sm:$0xff]
    %v267 = vld [vmem:[#allocation2 + $0x28] sm:$0xff]
    %v268 = vld [vmem:[#allocation2 + $0x30] sm:$0xff]
    %v269 = vld [vmem:[#allocation2 + $0x38] sm:$0xff]
    %v270 = vld [vmem:[#allocation2 + $0x40] sm:$0xff]
    %v271 = vld [vmem:[#allocation2 + $0x48] sm:$0xff]
    %v272 = vld [vmem:[#allocation2 + $0x50] sm:$0xff]
    %v273 = vld [vmem:[#allocation2 + $0x58] sm:$0xff]
    %v274 = vld [vmem:[#allocation2 + $0x60] sm:$0xff]
    %v275 = vld [vmem:[#allocation2 + $0x68] sm:$0xff]
    %v276 = vld [vmem:[#allocation2 + $0x70] sm:$0xff]
    %v277 = vld [vmem:[#allocation2 + $0x78] sm:$0xff]
    %v278 = vpack.c.bf16 %v263, %v262
    %v279 = vpack.c.bf16 %v265, %v264
    %v280 = vpack.c.bf16 %v267, %v266
    %v281 = vpack.c.bf16 %v269, %v268
    %v282 = vpack.c.bf16 %v271, %v270
    %v283 = vpack.c.bf16 %v273, %v272
    %v284 = vpack.c.bf16 %v275, %v274
    %v285 = vpack.c.bf16 %v277, %v276
    %v286 = vld [vmem:[%s2] sm:$0xf]
    %v287 = vld [vmem:[%s2 + $0x4] sm:$0xf]
    %v288 = vld [vmem:[%s2 + $0x8] sm:$0xf]
    %v289 = vld [vmem:[%s2 + $0xc] sm:$0xf]
    %v290 = vld [vmem:[%s2 + $0x10] sm:$0xf]
    %v291 = vld [vmem:[%s2 + $0x14] sm:$0xf]
    %v292 = vld [vmem:[%s2 + $0x18] sm:$0xf]
    %v293 = vld [vmem:[%s2 + $0x1c] sm:$0xf]
    %v294 = vld [vmem:[%s2 + $0x20] sm:$0xf]
    %v295 = vld [vmem:[%s2 + $0x24] sm:$0xf]
    %v296 = vld [vmem:[%s2 + $0x28] sm:$0xf]
    %v297 = vld [vmem:[%s2 + $0x2c] sm:$0xf]
    %v298 = vld [vmem:[%s2 + $0x30] sm:$0xf]
    %v299 = vld [vmem:[%s2 + $0x34] sm:$0xf]
    %v300 = vld [vmem:[%s2 + $0x38] sm:$0xf]
    %v301 = vld [vmem:[%s2 + $0x3c] sm:$0xf]
    %v318 = vunpack.c.l.b16 %v286
    %v319 = vunpack.c.l.b16 %v287
    %v320 = vunpack.c.l.b16 %v288
    %v321 = vunpack.c.l.b16 %v289
    %v322 = vunpack.c.l.b16 %v290
    %v323 = vunpack.c.l.b16 %v291
    %v324 = vunpack.c.l.b16 %v292
    %v325 = vunpack.c.l.b16 %v293
    %v326 = vunpack.c.l.b16 %v294
    %v327 = vunpack.c.l.b16 %v295
    %v328 = vunpack.c.l.b16 %v296
    %v329 = vunpack.c.l.b16 %v297
    %v330 = vunpack.c.l.b16 %v298
    %v331 = vunpack.c.l.b16 %v299
    %v332 = vunpack.c.l.b16 %v300
    %v333 = vunpack.c.l.b16 %v301
    %v334 = vpack.c.b16 %v319, %v318
    %v335 = vpack.c.b16 %v321, %v320
    %v336 = vpack.c.b16 %v323, %v322
    %v337 = vpack.c.b16 %v325, %v324
    %v338 = vpack.c.b16 %v327, %v326
    %v339 = vpack.c.b16 %v329, %v328
    %v340 = vpack.c.b16 %v331, %v330
    %v341 = vpack.c.b16 %v333, %v332
    %350 = vmatpush.bf16.msra.mxu0 %v341
    %351 = vmatpush.bf16.msra.mxu0 %v340
    %352 = vmatpush.bf16.msra.mxu0 %v339
    %353 = vmatpush.bf16.msra.mxu0 %v338
    %354 = vmatpush.bf16.msra.mxu0 %v337
    %355 = vmatpush.bf16.msra.mxu0 %v336
    %356 = vmatpush.bf16.msra.mxu0 %v335
    %357 = vmatpush.bf16.msra.mxu0 %v334
    %358 = vmatmul.bf16.gmra.mxu0 %v278
    %v359 = vpop.f32.mrf.mxu0
    %v360 = vadd.f32 0.0, %v359
    %v361 = vpop.f32.mrf.mxu0
    %v362 = vadd.f32 0.0, %v361
    %363 = vmatmul.bf16.gmra.mxu0 %v279
    %v364 = vpop.f32.mrf.mxu0
    %v365 = vadd.f32 0.0, %v364
    %v366 = vpop.f32.mrf.mxu0
    %v367 = vadd.f32 0.0, %v366
    %368 = vmatmul.bf16.gmra.mxu0 %v280
    %v369 = vpop.f32.mrf.mxu0
    %v370 = vadd.f32 0.0, %v369
    %v371 = vpop.f32.mrf.mxu0
    %v372 = vadd.f32 0.0, %v371
    %373 = vmatmul.bf16.gmra.mxu0 %v281
    %v374 = vpop.f32.mrf.mxu0
    %v375 = vadd.f32 0.0, %v374
    %v376 = vpop.f32.mrf.mxu0
    %v377 = vadd.f32 0.0, %v376
    %378 = vmatmul.bf16.gmra.mxu0 %v282
    %v379 = vpop.f32.mrf.mxu0
    %v380 = vadd.f32 0.0, %v379
    %v381 = vpop.f32.mrf.mxu0
    %v382 = vadd.f32 0.0, %v381
    %383 = vmatmul.bf16.gmra.mxu0 %v283
    %v384 = vpop.f32.mrf.mxu0
    %v385 = vadd.f32 0.0, %v384
    %v386 = vpop.f32.mrf.mxu0
    %v387 = vadd.f32 0.0, %v386
    %388 = vmatmul.bf16.gmra.mxu0 %v284
    %v389 = vpop.f32.mrf.mxu0
    %v390 = vadd.f32 0.0, %v389
    %v391 = vpop.f32.mrf.mxu0
    %v392 = vadd.f32 0.0, %v391
    %393 = vmatmul.bf16.gmra.mxu0 %v285
    %v394 = vpop.f32.mrf.mxu0
    %v395 = vadd.f32 0.0, %v394
    %v396 = vpop.f32.mrf.mxu0
    %v397 = vadd.f32 0.0, %v396
    %398 = vdwg.mxu0
    %399 = vst [vmem:[%s3] sm:$0xff] %v360
    %400 = vst [vmem:[%s3 + $0x8] sm:$0xff] %v362
    %401 = vst [vmem:[%s3 + $0x10] sm:$0xff] %v365
    %402 = vst [vmem:[%s3 + $0x18] sm:$0xff] %v367
    %403 = vst [vmem:[%s3 + $0x20] sm:$0xff] %v370
    %404 = vst [vmem:[%s3 + $0x28] sm:$0xff] %v372
    %405 = vst [vmem:[%s3 + $0x30] sm:$0xff] %v375
    %406 = vst [vmem:[%s3 + $0x38] sm:$0xff] %v377
    %407 = vst [vmem:[%s3 + $0x40] sm:$0xff] %v380
    %408 = vst [vmem:[%s3 + $0x48] sm:$0xff] %v382
    %409 = vst [vmem:[%s3 + $0x50] sm:$0xff] %v385
    %410 = vst [vmem:[%s3 + $0x58] sm:$0xff] %v387
    %411 = vst [vmem:[%s3 + $0x60] sm:$0xff] %v390
    %412 = vst [vmem:[%s3 + $0x68] sm:$0xff] %v392
    %413 = vst [vmem:[%s3 + $0x70] sm:$0xff] %v395
    %414 = vst [vmem:[%s3 + $0x78] sm:$0xff] %v397
  $region21: #{graph_conv.1} parent=0 // pred_fallthru
    _
  // Predicated region
  $region22: #{graph_conv.1} parent=0 // pred_check
    _
  $region23: #{graph_conv.1} parent=0 // pred_check_branch
    %416 = sbr.rel (0) target = $region25
  $region24: #{graph_conv.1} parent=0 // pred_region
    _
  $region25: #{graph_conv.1} parent=0 // pred_fallthru
    _
  // Predicated region
  $region26: #{graph_conv.1} parent=0 // pred_check
    _
  $region27: #{graph_conv.1} parent=0 // pred_check_branch
    %418 = sbr.rel (0) target = $region29
  $region28: #{graph_conv.1} parent=0 // pred_region
    _
  $region29: #{graph_conv.1} parent=0 // pred_fallthru
    _

</llo_original>
